<compile_context>
chip_gen: v7x
topology: tpu7x:2x2x1
jax: 0.10.0
libtpu: 0.0.40
codegen_flags: <defaults>
</compile_context>

<pallas_src>
import functools
import logging

import jax
import jax.numpy as jnp
import numpy as np
from jax.experimental import pallas as pl
from jax.experimental.pallas import tpu as pltpu

log = logging.getLogger(__name__)

_LANES = 128
_MIN_TILE_ROWS = 8               # one (8,128) vreg
_MIN_ELEMS = _MIN_TILE_ROWS * _LANES
_MAX_TILE_ROWS = 512             # (512,128) f32 = 256 KiB per input block


# ----------------------------------------------------------------------------
# Fused Pallas kernel: one streaming pass over (rows, 128) preds / trues that
# produces [min(t), max(t), sum((p-t)^2), sum(|p-t|)] packed into lanes 0..3 of
# a (1, 128) output row per chunk.
# ----------------------------------------------------------------------------
def _fused_stats_kernel(p_ref, t_ref, o_ref, mn_acc, mx_acc, ss_acc, sa_acc):
    i = pl.program_id(1)          # inner (reduction) axis within this chunk
    p = p_ref[...]
    t = t_ref[...]
    d = p - t

    @pl.when(i == 0)
    def _init():
        mn_acc[...] = t
        mx_acc[...] = t
        ss_acc[...] = d * d
        sa_acc[...] = jnp.abs(d)

    @pl.when(i > 0)
    def _accumulate():
        mn_acc[...] = jnp.minimum(mn_acc[...], t)
        mx_acc[...] = jnp.maximum(mx_acc[...], t)
        ss_acc[...] = ss_acc[...] + d * d
        sa_acc[...] = sa_acc[...] + jnp.abs(d)

    @pl.when(i == pl.num_programs(1) - 1)
    def _finalize():
        # Cross-lane reductions happen exactly once per chunk, at the last step.
        mn_b = jnp.broadcast_to(jnp.min(mn_acc[...], keepdims=True), (1, _LANES))
        mx_b = jnp.broadcast_to(jnp.max(mx_acc[...], keepdims=True), (1, _LANES))
        ss_b = jnp.broadcast_to(jnp.sum(ss_acc[...], keepdims=True), (1, _LANES))
        sa_b = jnp.broadcast_to(jnp.sum(sa_acc[...], keepdims=True), (1, _LANES))
        lane = jax.lax.broadcasted_iota(jnp.int32, (1, _LANES), 1)
        o_ref[...] = jnp.where(
            lane == 0, mn_b,
            jnp.where(lane == 1, mx_b, jnp.where(lane == 2, ss_b, sa_b)))


@functools.lru_cache(maxsize=None)
def _build_fused_call(rows, tile_rows, n_chunks):
    tiles_per_chunk = rows // (n_chunks * tile_rows)
    grid = (n_chunks, tiles_per_chunk)

    def in_map(c, i):
        return (c * tiles_per_chunk + i, 0)

    return pl.pallas_call(
        _fused_stats_kernel,
        out_shape=jax.ShapeDtypeStruct((n_chunks, _LANES), jnp.float32),
        grid_spec=pltpu.PrefetchScalarGridSpec(
            num_scalar_prefetch=0,
            grid=grid,
            in_specs=[
                pl.BlockSpec((tile_rows, _LANES), in_map),
                pl.BlockSpec((tile_rows, _LANES), in_map),
            ],
            out_specs=pl.BlockSpec((1, _LANES), lambda c, i: (c, 0)),
            scratch_shapes=[pltpu.VMEM((tile_rows, _LANES), jnp.float32)] * 4,
        ),
        compiler_params=pltpu.CompilerParams(
            dimension_semantics=("parallel", "arbitrary")),
    )


def _pad_1d(x, target_len, fill):
    pad_len = target_len - x.shape[0]
    if pad_len == 0:
        return x
    return jnp.concatenate([x, jnp.full((pad_len,), fill, dtype=x.dtype)], axis=0)


def fused_stats(preds, trues):
    """One fused device pass. Returns (host np.ndarray [min, max, sum_sq, sum_abs], n)."""
    p = jnp.ravel(jnp.asarray(preds, dtype=jnp.float32))
    t = jnp.ravel(jnp.asarray(trues, dtype=jnp.float32))
    if p.shape != t.shape:
        raise ValueError("preds / trues shape mismatch")
    n = int(t.shape[0])
    if n == 0:
        # min == max  ->  uniqueness gate stays closed, no metrics computed.
        return np.zeros((4,), dtype=np.float64), n

    # Bucket the padded length to a power of two (>= one full vreg set) so the
    # Mosaic kernel is recompiled only at log2 growth points, not every step.
    n_pad = max(int(pl.next_power_of_2(n)), _MIN_ELEMS)

    # Pad both arrays with trues[0]: min/max of trues unchanged, diff at the
    # padded positions is 0 so the sums are unchanged.
    fill = t[0]
    p = _pad_1d(p, n_pad, fill)
    t = _pad_1d(t, n_pad, fill)

    rows = n_pad // _LANES                     # power of two, >= 8
    n_chunks = 2 if rows >= 2 * _MIN_TILE_ROWS else 1   # megacore split (v7x)
    rows_per_chunk = rows // n_chunks
    tile_rows = min(_MAX_TILE_ROWS, rows_per_chunk)     # powers of two -> exact division

    out = _build_fused_call(rows, tile_rows, n_chunks)(
        p.reshape(rows, _LANES), t.reshape(rows, _LANES))      # (n_chunks, 128)

    # Single device->host sync; combine the (<=2) per-chunk partials on host.
    host = np.asarray(jax.device_get(out), dtype=np.float64)
    stats = np.array(
        [host[:, 0].min(), host[:, 1].max(), host[:, 2].sum(), host[:, 3].sum()],
        dtype=np.float64)
    return stats, n


# ----------------------------------------------------------------------------
# Synthetic metric callables (stand-ins for the `*metrics` constructor args).
# They consume the precomputed fused stats when available and also work as
# standalone (preds, trues) callables.
# ----------------------------------------------------------------------------
class MSE:
    def from_stats(self, stats, n):
        return float(stats[2] / n)

    def __call__(self, preds, trues):
        stats, n = fused_stats(preds, trues)
        return self.from_stats(stats, n)


class MAE:
    def from_stats(self, stats, n):
        return float(stats[3] / n)

    def __call__(self, preds, trues):
        stats, n = fused_stats(preds, trues)
        return self.from_stats(stats, n)


# ----------------------------------------------------------------------------
# AggregateMetrics — JAX/Pallas port of the PyTorch module.
# ----------------------------------------------------------------------------
class AggregateMetrics:
    def __init__(self, *metrics):
        self.trues = []
        self.preds = []
        self.metrics = metrics

    def forward(self, y_pred, y_true, mode="train"):
        # .cpu() / .detach() equivalents: stop_gradient; arrays stay on device.
        self.trues.append(jnp.asarray(y_true))
        self.preds.append(jax.lax.stop_gradient(jnp.asarray(y_pred)))
        trues = jnp.concatenate(self.trues, axis=0)
        preds = jnp.concatenate(self.preds, axis=0)

        results = {}

        # One fused device pass producing min/max/sum_sq/sum_abs.
        try:
            stats, n = fused_stats(preds, trues)
            fused_ok = True
        except ValueError:
            # Shape mismatch: still compute the uniqueness gate on trues alone
            # (diff terms are 0); metrics will raise ValueError individually.
            stats, n = fused_stats(trues, trues)
            fused_ok = False

        # len(trues.unique()) != 1  <=>  min(trues) != max(trues)
        if bool(stats[0] != stats[1]):
            for metric in self.metrics:
                name = f"{mode}/{metric.__class__.__name__.lower()}"
                try:
                    if fused_ok and hasattr(metric, "from_stats"):
                        results[name] = metric.from_stats(stats, n)
                    else:
                        results[name] = metric(preds, trues)
                except ValueError:
                    log.error(f"{metric.__class__.__name__} metric failed.")
                    continue
        return results

    __call__ = forward

    def reset(self):
        self.trues = []
        self.preds = []


# ----------------------------------------------------------------------------
if __name__ == "__main__":
    key = jax.random.PRNGKey(0)
    k1, k2, k3, k4, k5, k6 = jax.random.split(key, 6)

    agg = AggregateMetrics(MSE(), MAE())

    # First batch: predictions in [0,1], binary ground-truth labels.
    y_pred_1 = jax.random.uniform(k1, (8,), dtype=jnp.float32)
    y_true_1 = (jax.random.uniform(k2, (8,)) > 0.5).astype(jnp.float32)
    res1 = agg(y_pred_1, y_true_1, mode="train")

    # Second batch: state accumulates; metrics run over all 16 samples.
    y_pred_2 = jax.random.uniform(k3, (8,), dtype=jnp.float32)
    y_true_2 = (jax.random.uniform(k4, (8,)) > 0.5).astype(jnp.float32)
    res2 = agg(y_pred_2, y_true_2, mode="train")

    jax.block_until_ready((res1, res2))

    # With binary labels from PRNGKey(0) the uniqueness check passes.
    assert set(res2.keys()) == {"train/mse", "train/mae"}, res2.keys()

    # Numerical check against a pure-jnp reference over the accumulated history.
    preds_all = jnp.concatenate([y_pred_1, y_pred_2]).ravel()
    trues_all = jnp.concatenate([y_true_1, y_true_2]).ravel()
    mse_ref = float(jnp.mean((preds_all - trues_all) ** 2))
    mae_ref = float(jnp.mean(jnp.abs(preds_all - trues_all)))
    assert abs(float(res2["train/mse"]) - mse_ref) < 1e-5, (res2, mse_ref)
    assert abs(float(res2["train/mae"]) - mae_ref) < 1e-5, (res2, mae_ref)

    # Larger standalone check: exercises padding + the 2-chunk ("parallel") path.
    big_p = jax.random.uniform(k5, (2560,), dtype=jnp.float32)
    big_t = (jax.random.uniform(k6, (2560,)) > 0.5).astype(jnp.float32)
    stats_big, n_big = fused_stats(big_p, big_t)
    mse_big_ref = float(jnp.mean((big_p - big_t) ** 2))
    mae_big_ref = float(jnp.mean(jnp.abs(big_p - big_t)))
    assert abs(float(stats_big[2] / n_big) - mse_big_ref) < 1e-4, (stats_big, mse_big_ref)
    assert abs(float(stats_big[3] / n_big) - mae_big_ref) < 1e-4, (stats_big, mae_big_ref)
    assert float(stats_big[0]) == 0.0 and float(stats_big[1]) == 1.0, stats_big

    # Uniqueness gate: constant labels -> empty results dict.
    agg2 = AggregateMetrics(MSE(), MAE())
    res3 = agg2(y_pred_1, jnp.zeros((8,), jnp.float32), mode="train")
    assert res3 == {}, res3

    agg.reset()
    assert agg.trues == [] and agg.preds == []

    print("KERNEL_OK")
</pallas_src>

<mosaic_0001>
module attributes {stable_mosaic.version = 11 : i64} {
  func.func @_fused_stats_kernel(%arg0: i32, %arg1: i32, %arg2: memref<8x128xf32, #tpu.memory_space<vmem>>, %arg3: memref<8x128xf32, #tpu.memory_space<vmem>>, %arg4: memref<1x128xf32, #tpu.memory_space<vmem>>, %arg5: memref<8x128xf32, #tpu.memory_space<vmem>>, %arg6: memref<8x128xf32, #tpu.memory_space<vmem>>, %arg7: memref<8x128xf32, #tpu.memory_space<vmem>>, %arg8: memref<8x128xf32, #tpu.memory_space<vmem>>) attributes {dimension_semantics = [#tpu.dimension_semantics<parallel>, #tpu.dimension_semantics<arbitrary>], iteration_bounds = array<i64: 1, 1>, scalar_prefetch = 0 : i64, scratch_operands = 4 : i64, tpu.core_type = #tpu.core_type<tc>, window_params = [{transform_indices = @transform_0, window_bounds = array<i64: 8, 128>}, {transform_indices = @transform_1, window_bounds = array<i64: 8, 128>}, {transform_indices = @transform_2, window_bounds = array<i64: 1, 128>}]} {
    %c0 = arith.constant 0 : index
    %c0_0 = arith.constant 0 : index
    %0 = vector.load %arg2[%c0, %c0_0] : memref<8x128xf32, #tpu.memory_space<vmem>>, vector<8x128xf32>
    %c0_1 = arith.constant 0 : index
    %c0_2 = arith.constant 0 : index
    %1 = vector.load %arg3[%c0_1, %c0_2] : memref<8x128xf32, #tpu.memory_space<vmem>>, vector<8x128xf32>
    %2 = arith.subf %0, %1 : vector<8x128xf32>
    %c0_i32 = arith.constant 0 : i32
    %3 = arith.cmpi eq, %arg1, %c0_i32 : i32
    %4 = arith.extui %3 : i1 to i32
    %c0_i32_3 = arith.constant 0 : i32
    %5 = arith.cmpi ne, %4, %c0_i32_3 : i32
    scf.if %5 {
      %c0_8 = arith.constant 0 : index
      %c0_9 = arith.constant 0 : index
      %12 = vector.load %arg5[%c0_8, %c0_9] : memref<8x128xf32, #tpu.memory_space<vmem>>, vector<8x128xf32>
      tpu.vector_store %arg5[%c0_8, %c0_9], %1 {strides = array<i32>} : memref<8x128xf32, #tpu.memory_space<vmem>>, vector<8x128xf32>,
      %c0_10 = arith.constant 0 : index
      %c0_11 = arith.constant 0 : index
      %13 = vector.load %arg6[%c0_10, %c0_11] : memref<8x128xf32, #tpu.memory_space<vmem>>, vector<8x128xf32>
      tpu.vector_store %arg6[%c0_10, %c0_11], %1 {strides = array<i32>} : memref<8x128xf32, #tpu.memory_space<vmem>>, vector<8x128xf32>,
      %14 = arith.mulf %2, %2 : vector<8x128xf32>
      %c0_12 = arith.constant 0 : index
      %c0_13 = arith.constant 0 : index
      %15 = vector.load %arg7[%c0_12, %c0_13] : memref<8x128xf32, #tpu.memory_space<vmem>>, vector<8x128xf32>
      tpu.vector_store %arg7[%c0_12, %c0_13], %14 {strides = array<i32>} : memref<8x128xf32, #tpu.memory_space<vmem>>, vector<8x128xf32>,
      %16 = math.absf %2 : vector<8x128xf32>
      %c0_14 = arith.constant 0 : index
      %c0_15 = arith.constant 0 : index
      %17 = vector.load %arg8[%c0_14, %c0_15] : memref<8x128xf32, #tpu.memory_space<vmem>>, vector<8x128xf32>
      tpu.vector_store %arg8[%c0_14, %c0_15], %16 {strides = array<i32>} : memref<8x128xf32, #tpu.memory_space<vmem>>, vector<8x128xf32>,
    } else {
    }
    %c0_i32_4 = arith.constant 0 : i32
    %6 = arith.cmpi sgt, %arg1, %c0_i32_4 : i32
    %7 = arith.extui %6 : i1 to i32
    %c0_i32_5 = arith.constant 0 : i32
    %8 = arith.cmpi ne, %7, %c0_i32_5 : i32
    scf.if %8 {
      %c0_8 = arith.constant 0 : index
      %c0_9 = arith.constant 0 : index
      %12 = vector.load %arg5[%c0_8, %c0_9] : memref<8x128xf32, #tpu.memory_space<vmem>>, vector<8x128xf32>
      %13 = arith.minimumf %12, %1 : vector<8x128xf32>
      %c0_10 = arith.constant 0 : index
      %c0_11 = arith.constant 0 : index
      %14 = vector.load %arg5[%c0_10, %c0_11] : memref<8x128xf32, #tpu.memory_space<vmem>>, vector<8x128xf32>
      tpu.vector_store %arg5[%c0_10, %c0_11], %13 {strides = array<i32>} : memref<8x128xf32, #tpu.memory_space<vmem>>, vector<8x128xf32>,
      %c0_12 = arith.constant 0 : index
      %c0_13 = arith.constant 0 : index
      %15 = vector.load %arg6[%c0_12, %c0_13] : memref<8x128xf32, #tpu.memory_space<vmem>>, vector<8x128xf32>
      %16 = arith.maximumf %15, %1 : vector<8x128xf32>
      %c0_14 = arith.constant 0 : index
      %c0_15 = arith.constant 0 : index
      %17 = vector.load %arg6[%c0_14, %c0_15] : memref<8x128xf32, #tpu.memory_space<vmem>>, vector<8x128xf32>
      tpu.vector_store %arg6[%c0_14, %c0_15], %16 {strides = array<i32>} : memref<8x128xf32, #tpu.memory_space<vmem>>, vector<8x128xf32>,
      %c0_16 = arith.constant 0 : index
      %c0_17 = arith.constant 0 : index
      %18 = vector.load %arg7[%c0_16, %c0_17] : memref<8x128xf32, #tpu.memory_space<vmem>>, vector<8x128xf32>
      %19 = arith.mulf %2, %2 : vector<8x128xf32>
      %20 = arith.addf %18, %19 : vector<8x128xf32>
      %c0_18 = arith.constant 0 : index
      %c0_19 = arith.constant 0 : index
      %21 = vector.load %arg7[%c0_18, %c0_19] : memref<8x128xf32, #tpu.memory_space<vmem>>, vector<8x128xf32>
      tpu.vector_store %arg7[%c0_18, %c0_19], %20 {strides = array<i32>} : memref<8x128xf32, #tpu.memory_space<vmem>>, vector<8x128xf32>,
      %c0_20 = arith.constant 0 : index
      %c0_21 = arith.constant 0 : index
      %22 = vector.load %arg8[%c0_20, %c0_21] : memref<8x128xf32, #tpu.memory_space<vmem>>, vector<8x128xf32>
      %23 = math.absf %2 : vector<8x128xf32>
      %24 = arith.addf %22, %23 : vector<8x128xf32>
      %c0_22 = arith.constant 0 : index
      %c0_23 = arith.constant 0 : index
      %25 = vector.load %arg8[%c0_22, %c0_23] : memref<8x128xf32, #tpu.memory_space<vmem>>, vector<8x128xf32>
      tpu.vector_store %arg8[%c0_22, %c0_23], %24 {strides = array<i32>} : memref<8x128xf32, #tpu.memory_space<vmem>>, vector<8x128xf32>,
    } else {
    }
    %c0_i32_6 = arith.constant 0 : i32
    %9 = arith.cmpi eq, %arg1, %c0_i32_6 : i32
    %10 = arith.extui %9 : i1 to i32
    %c0_i32_7 = arith.constant 0 : i32
    %11 = arith.cmpi ne, %10, %c0_i32_7 : i32
    scf.if %11 {
      %c0_8 = arith.constant 0 : index
      %c0_9 = arith.constant 0 : index
      %12 = vector.load %arg5[%c0_8, %c0_9] : memref<8x128xf32, #tpu.memory_space<vmem>>, vector<8x128xf32>
      %13 = vector.shape_cast %12 : vector<8x128xf32> to vector<1x8x128xf32>
      %cst = arith.constant dense<0x7F800000> : vector<1xf32>
      %14 = vector.multi_reduction <minimumf>, %13, %cst [1, 2] : vector<1x8x128xf32> to vector<1xf32>
      %15 = vector.shape_cast %14 : vector<1xf32> to vector<1x1x1xf32>
      %16 = vector.extract %15[0, 0, 0] : f32 from vector<1x1x1xf32>
      %17 = vector.broadcast %16 : f32 to vector<1x1xf32>
      %18 = vector.shape_cast %17 : vector<1x1xf32> to vector<1x1xf32>
      %19 = vector.broadcast %18 : vector<1x1xf32> to vector<1x128xf32>
      %c0_10 = arith.constant 0 : index
      %c0_11 = arith.constant 0 : index
      %20 = vector.load %arg6[%c0_10, %c0_11] : memref<8x128xf32, #tpu.memory_space<vmem>>, vector<8x128xf32>
      %21 = vector.shape_cast %20 : vector<8x128xf32> to vector<1x8x128xf32>
      %cst_12 = arith.constant dense<0xFF800000> : vector<1xf32>
      %22 = vector.multi_reduction <maximumf>, %21, %cst_12 [1, 2] : vector<1x8x128xf32> to vector<1xf32>
      %23 = vector.shape_cast %22 : vector<1xf32> to vector<1x1x1xf32>
      %24 = vector.extract %23[0, 0, 0] : f32 from vector<1x1x1xf32>
      %25 = vector.broadcast %24 : f32 to vector<1x1xf32>
      %26 = vector.shape_cast %25 : vector<1x1xf32> to vector<1x1xf32>
      %27 = vector.broadcast %26 : vector<1x1xf32> to vector<1x128xf32>
      %c0_13 = arith.constant 0 : index
      %c0_14 = arith.constant 0 : index
      %28 = vector.load %arg7[%c0_13, %c0_14] : memref<8x128xf32, #tpu.memory_space<vmem>>, vector<8x128xf32>
      %29 = vector.shape_cast %28 : vector<8x128xf32> to vector<1x8x128xf32>
      %cst_15 = arith.constant dense<0.000000e+00> : vector<1xf32>
      %30 = vector.multi_reduction <add>, %29, %cst_15 [1, 2] : vector<1x8x128xf32> to vector<1xf32>
      %31 = vector.shape_cast %30 : vector<1xf32> to vector<1x1x1xf32>
      %32 = vector.extract %31[0, 0, 0] : f32 from vector<1x1x1xf32>
      %33 = vector.broadcast %32 : f32 to vector<1x1xf32>
      %34 = vector.shape_cast %33 : vector<1x1xf32> to vector<1x1xf32>
      %35 = vector.broadcast %34 : vector<1x1xf32> to vector<1x128xf32>
      %c0_16 = arith.constant 0 : index
      %c0_17 = arith.constant 0 : index
      %36 = vector.load %arg8[%c0_16, %c0_17] : memref<8x128xf32, #tpu.memory_space<vmem>>, vector<8x128xf32>
      %37 = vector.shape_cast %36 : vector<8x128xf32> to vector<1x8x128xf32>
      %cst_18 = arith.constant dense<0.000000e+00> : vector<1xf32>
      %38 = vector.multi_reduction <add>, %37, %cst_18 [1, 2] : vector<1x8x128xf32> to vector<1xf32>
      %39 = vector.shape_cast %38 : vector<1xf32> to vector<1x1x1xf32>
      %40 = vector.extract %39[0, 0, 0] : f32 from vector<1x1x1xf32>
      %41 = vector.broadcast %40 : f32 to vector<1x1xf32>
      %42 = vector.shape_cast %41 : vector<1x1xf32> to vector<1x1xf32>
      %43 = vector.broadcast %42 : vector<1x1xf32> to vector<1x128xf32>
      %44 = tpu.iota {dimensions = array<i32: 1>} : vector<1x128xi32>
      %c0_i32_19 = arith.constant 0 : i32
      %45 = vector.broadcast %c0_i32_19 : i32 to vector<1x128xi32>
      %46 = arith.cmpi eq, %44, %45 : vector<1x128xi32>
      %c1_i32 = arith.constant 1 : i32
      %47 = vector.broadcast %c1_i32 : i32 to vector<1x128xi32>
      %48 = arith.cmpi eq, %44, %47 : vector<1x128xi32>
      %c2_i32 = arith.constant 2 : i32
      %49 = vector.broadcast %c2_i32 : i32 to vector<1x128xi32>
      %50 = arith.cmpi eq, %44, %49 : vector<1x128xi32>
      %51 = arith.select %50, %35, %43 : vector<1x128xi1>, vector<1x128xf32>
      %52 = arith.select %48, %27, %51 : vector<1x128xi1>, vector<1x128xf32>
      %53 = arith.select %46, %19, %52 : vector<1x128xi1>, vector<1x128xf32>
      %c0_20 = arith.constant 0 : index
      %c0_21 = arith.constant 0 : index
      %54 = vector.load %arg4[%c0_20, %c0_21] : memref<1x128xf32, #tpu.memory_space<vmem>>, vector<1x128xf32>
      tpu.vector_store %arg4[%c0_20, %c0_21], %53 {strides = array<i32>} : memref<1x128xf32, #tpu.memory_space<vmem>>, vector<1x128xf32>,
    } else {
    }
    return
  }
  func.func @transform_0(%arg0: i32, %arg1: i32) -> (i32, i32) {
    %c1_i32 = arith.constant 1 : i32
    %0 = arith.muli %arg0, %c1_i32 : i32
    %1 = arith.addi %0, %arg1 : i32
    %c0_i32 = arith.constant 0 : i32
    %c0_i32_0 = arith.constant 0 : i32
    return %1, %c0_i32 : i32, i32
  }
  func.func @transform_1(%arg0: i32, %arg1: i32) -> (i32, i32) {
    %c1_i32 = arith.constant 1 : i32
    %0 = arith.muli %arg0, %c1_i32 : i32
    %1 = arith.addi %0, %arg1 : i32
    %c0_i32 = arith.constant 0 : i32
    %c0_i32_0 = arith.constant 0 : i32
    return %1, %c0_i32 : i32, i32
  }
  func.func @transform_2(%arg0: i32, %arg1: i32) -> (i32, i32) {
    %c0_i32 = arith.constant 0 : i32
    %c0_i32_0 = arith.constant 0 : i32
    return %arg0, %c0_i32 : i32, i32
  }
}

</mosaic_0001>

<llo_original>
// kernel: tpu_custom_call.1
$region0: #{tpu_custom_call.1}
  #allocation0 [shape = 'u32[]', space=smem, size = 0x4, offset = 0x4, fixed_abs, tag = 'smem constant byte address 0x4 - core index']
  #allocation1 [shape = 'u32[144,128]{1,0:T(1,128)}', space=vmem, size = 0x12000, scoped, tag = 'internal scratch']
  #allocation2 [shape = 'f32[8,128]{1,0:T(8,128)}', space=vmem, size = 0x1000, scoped, tag = 'scratch operand']
  #allocation3 [shape = 'f32[8,128]{1,0:T(8,128)}', space=vmem, size = 0x1000, scoped, tag = 'scratch operand']
  #allocation4 [shape = 'f32[8,128]{1,0:T(8,128)}', space=vmem, size = 0x1000, scoped, tag = 'scratch operand']
  #allocation5 [shape = 'f32[8,128]{1,0:T(8,128)}', space=vmem, size = 0x1000, scoped, tag = 'scratch operand']
  %s0 = inlined_call_operand.hbm [shape: f32[8,128], index: 0, kind: input, shape index: {}]
  %s1 = inlined_call_operand.hbm [shape: f32[8,128], index: 1, kind: input, shape index: {}]
  %s2 = inlined_call_operand.hbm [shape: f32[1,128], index: 2, kind: output, shape index: {}]
  %s3 = sld [smem:[#allocation0]]
  $region38: #{tpu_custom_call.1} parent=0
    _
  %s5 = ssub.s32 1, %s3
  %s6 = scalar_select 0, %s5, %s3
  $region1: #{tpu_custom_call.1} parent=0
    #allocation6 [shape = 'u8[4096]{0}', space=vmem, size = 0x1000, scoped, tag = 'input window, operand 0, single buffered']
    #allocation7 [shape = 's32[1]{0}', space=sflag, size = 0x4, scoped, tag = 'scoped memory for tpu_custom_call.1']
    #allocation8 [shape = 's32[1]{0}', space=sflag, size = 0x4, scoped, tag = 'scoped memory for tpu_custom_call.1']
    #allocation9 [shape = 'u8[4096]{0}', space=vmem, size = 0x1000, scoped, tag = 'input window, operand 1, single buffered']
    #allocation10 [shape = 's32[1]{0}', space=sflag, size = 0x4, scoped, tag = 'scoped memory for tpu_custom_call.1']
    #allocation11 [shape = 'u8[512]{0}', space=vmem, size = 0x400, scoped, tag = 'output window, operand 0, single buffered']
    %7 = vsyncpa [#allocation7], 0
    %8 = vsyncpa [#allocation10], 0
    %9 = vsyncpa [#allocation8], 0
    // Predicated region
    $region2: #{tpu_custom_call.1} parent=1 // pred_check
      _
    $region3: #{tpu_custom_call.1} parent=1 // pred_check_branch
      %11 = sbr.rel (0) target = $region5
    $region4: #{tpu_custom_call.1} parent=1 // pred_region
      %s12 = sadd.s32 0, 0
      %s14 = ssub.s32 128, 128
      %15 = vsyncadd [#allocation7], %s14
      %s16 = smul.addr %s12, 128
      %s17 = scalar_lea.hbm %s0, %s16
      %s19 = sshll.u32 [#allocation6], 4
      %s20 = int_to_ptr.vmem [resolvable:$true] %s19
      %22 = dma.hbm_to_vmem [thread:$0]  %s17, 128, %s20, [#allocation7]
    $region5: #{tpu_custom_call.1} parent=1 // pred_fallthru
      _
    // Predicated region
    $region6: #{tpu_custom_call.1} parent=1 // pred_check
      _
    $region7: #{tpu_custom_call.1} parent=1 // pred_check_branch
      %24 = sbr.rel (0) target = $region9
    $region8: #{tpu_custom_call.1} parent=1 // pred_region
      %s25 = sadd.s32 0, 0
      %s27 = ssub.s32 128, 128
      %28 = vsyncadd [#allocation10], %s27
      %s29 = smul.addr %s25, 128
      %s30 = scalar_lea.hbm %s1, %s29
      %s32 = sshll.u32 [#allocation9], 4
      %s33 = int_to_ptr.vmem [resolvable:$true] %s32
      %35 = dma.hbm_to_vmem [thread:$0]  %s30, 128, %s33, [#allocation10]
    $region9: #{tpu_custom_call.1} parent=1 // pred_fallthru
      _
    // Predicated region
    $region10: #{tpu_custom_call.1} parent=1 // pred_check
      _
    $region11: #{tpu_custom_call.1} parent=1 // pred_check_branch
      %37 = sbr.rel (0) target = $region13
    $region12: #{tpu_custom_call.1} parent=1 // pred_region
      %38 = dma.done [#allocation7], 128
    $region13: #{tpu_custom_call.1} parent=1 // pred_fallthru
      _
    // Predicated region
    $region14: #{tpu_custom_call.1} parent=1 // pred_check
      _
    $region15: #{tpu_custom_call.1} parent=1 // pred_check_branch
      %40 = sbr.rel (0) target = $region17
    $region16: #{tpu_custom_call.1} parent=1 // pred_region
      %41 = dma.done [#allocation10], 128
    $region17: #{tpu_custom_call.1} parent=1 // pred_fallthru
      _
    %s42 = sadd.s32 0, 0
    %s43 = sadd.s32 0, 0
    %v44 = vld [vmem:[#allocation6] sm:$0xff]
    %v45 = vld [vmem:[#allocation9] sm:$0xff]
    %v46 = vsub.f32 %v44, %v45
    %p47 = scmp.eq.s32.totalorder 0, 0
    // Predicated region
    $region18: #{tpu_custom_call.1} parent=1 // pred_check
      %p48 = pneg %p47
    $region19: #{tpu_custom_call.1} parent=1 // pred_check_branch
      %50 = sbr.rel (%p48) target = $region21
    $region20: #{tpu_custom_call.1} parent=1 // pred_region
      %51 = vst [vmem:[#allocation2] sm:$0xff] %v45
      %52 = vst [vmem:[#allocation3] sm:$0xff] %v45
      %v53 = vmul.f32 %v46, %v46
      %54 = vst [vmem:[#allocation4] sm:$0xff] %v53
      %v55 = vand.u32 2147483647, %v46
      %56 = vst [vmem:[#allocation5] sm:$0xff] %v55
    $region21: #{tpu_custom_call.1} parent=1 // pred_fallthru
      _
    %p57 = scmp.gt.s32.totalorder 0, 0
    // Predicated region
    $region22: #{tpu_custom_call.1} parent=1 // pred_check
      %p58 = pneg %p57
    $region23: #{tpu_custom_call.1} parent=1 // pred_check_branch
      %60 = sbr.rel (%p58) target = $region25
    $region24: #{tpu_custom_call.1} parent=1 // pred_region
      %v61 = vld [vmem:[#allocation2] sm:$0xff]
      %v62 = vmin.f32 %v61, %v45
      %63 = vst [vmem:[#allocation2] sm:$0xff] %v62
      %v64 = vld [vmem:[#allocation3] sm:$0xff]
      %v65 = vmax.f32 %v64, %v45
      %66 = vst [vmem:[#allocation3] sm:$0xff] %v65
      %v67 = vld [vmem:[#allocation4] sm:$0xff]
      %v68 = vmul.f32 %v46, %v46
      %v69 = vadd.f32 %v67, %v68
      %70 = vst [vmem:[#allocation4] sm:$0xff] %v69
      %v71 = vld [vmem:[#allocation5] sm:$0xff]
      %v72 = vand.u32 2147483647, %v46
      %v73 = vadd.f32 %v71, %v72
      %74 = vst [vmem:[#allocation5] sm:$0xff] %v73
    $region25: #{tpu_custom_call.1} parent=1 // pred_fallthru
      _
    // Predicated region
    $region26: #{tpu_custom_call.1} parent=1 // pred_check
      %p75 = pneg %p47
    $region27: #{tpu_custom_call.1} parent=1 // pred_check_branch
      %77 = sbr.rel (%p75) target = $region29
    $region28: #{tpu_custom_call.1} parent=1 // pred_region
      %v78 = vld [vmem:[#allocation2] sm:$0xff]
      %79 = vmin.xlane.f32.xlu0 %v78
      %v80 = vpop.xlane.xlu0 %79
      %v81 = vrot.slane %v80, 4
      %v82 = vmin.f32 %v80, %v81
      %v83 = vrot.slane %v82, 2
      %v84 = vmin.f32 %v82, %v83
      %v85 = vrot.slane %v84, 1
      %v86 = vmin.f32 %v84, %v85
      %s87 = vtos %v86
      %v88 = vstv %s87
      %v89 = vld [vmem:[#allocation3] sm:$0xff]
      %90 = vmax.xlane.f32.xlu0 %v89
      %v91 = vpop.xlane.xlu0 %90
      %v92 = vrot.slane %v91, 4
      %v93 = vmax.f32 %v91, %v92
      %v94 = vrot.slane %v93, 2
      %v95 = vmax.f32 %v93, %v94
      %v96 = vrot.slane %v95, 1
      %v97 = vmax.f32 %v95, %v96
      %s98 = vtos %v97
      %v99 = vstv %s98
      %v100 = vld [vmem:[#allocation4] sm:$0xff]
      %101 = vadd.xlane.f32.xlu0 %v100
      %v102 = vpop.xlane.xlu0 %101
      %v103 = vrot.slane %v102, 4
      %v104 = vadd.f32 %v102, %v103
      %v105 = vrot.slane %v104, 2
      %v106 = vadd.f32 %v104, %v105
      %v107 = vrot.slane %v106, 1
      %v108 = vadd.f32 %v106, %v107
      %s109 = vtos %v108
      %v110 = vstv %s109
      %v111 = vld [vmem:[#allocation5] sm:$0xff]
      %112 = vadd.xlane.f32.xlu0 %v111
      %v113 = vpop.xlane.xlu0 %112
      %v114 = vrot.slane %v113, 4
      %v115 = vadd.f32 %v113, %v114
      %v116 = vrot.slane %v115, 2
      %v117 = vadd.f32 %v115, %v116
      %v118 = vrot.slane %v117, 1
      %v119 = vadd.f32 %v117, %v118
      %s120 = vtos %v119
      %v121 = vstv %s120
      %v122 = vlaneseq
      %v123 = vand.u32 %v122, 127
      %vm124 = vcmp.eq.s32.totalorder %v123, 0
      %vm125 = vcmp.eq.s32.totalorder %v123, 1
      %vm126 = vcmp.eq.s32.totalorder %v123, 2
      %v127 = vsel %vm126, %v110, %v121
      %v128 = vsel %vm125, %v99, %v127
      %v129 = vsel %vm124, %v88, %v128
      %130 = vst [vmem:[#allocation11] sm:$0x1] %v129
    $region29: #{tpu_custom_call.1} parent=1 // pred_fallthru
      _
    // Predicated region
    $region30: #{tpu_custom_call.1} parent=1 // pred_check
      _
    $region31: #{tpu_custom_call.1} parent=1 // pred_check_branch
      %132 = sbr.rel (0) target = $region33
    $region32: #{tpu_custom_call.1} parent=1 // pred_region
      %s134 = ssub.s32 16, 16
      %135 = vsyncadd [#allocation8], %s134
      %s137 = sshll.u32 [#allocation11], 4
      %s138 = int_to_ptr.vmem [resolvable:$true] %s137
      %140 = dma.vmem_to_hbm [thread:$0]  %s138, 16, %s2, [#allocation8]
    $region33: #{tpu_custom_call.1} parent=1 // pred_fallthru
      _
    // Predicated region
    $region34: #{tpu_custom_call.1} parent=1 // pred_check
      _
    $region35: #{tpu_custom_call.1} parent=1 // pred_check_branch
      %142 = sbr.rel (0) target = $region37
    $region36: #{tpu_custom_call.1} parent=1 // pred_region
      %143 = dma.done [#allocation8], 16
    $region37: #{tpu_custom_call.1} parent=1 // pred_fallthru
      _
    %144 = vsyncpa [#allocation7], 1
    %145 = vsyncpa [#allocation10], 1
    %146 = vsyncpa [#allocation8], 1

</llo_original>
